<compile_context>
chip_gen: v5e
topology: v5e:2x2
jax: 0.10.0
libtpu: 0.0.40
codegen_flags: <defaults>
</compile_context>

<pallas_src>
import jax
import jax.numpy as jnp
from jax.experimental import pallas as pl
from jax.experimental.pallas import tpu as pltpu


def _cat_view_relu_kernel(x_ref, o_ref):
    # x_ref: (3, 4)  ->  o_ref: (6, 4)   (flat rows r0, r0, r1, r1, r2, r2)
    x = jnp.maximum(x_ref[...], 0.0)          # ReLU once on the source tile (VPU)
    r0 = x[0:1, :]
    r1 = x[1:2, :]
    r2 = x[2:3, :]
    # Row duplication in registers (XLU sublane concatenate, otherwise idle),
    # then a single full-tile store.
    o_ref[...] = jnp.concatenate([r0, r0, r1, r1, r2, r2], axis=0)


def cat_view_relu(x):
    """x: (1, 3, 4) float32 -> (2, 3, 4) float32.

    Gridless single-block call; kernel works on a single (6, 4) tile.  The
    surrounding reshapes are free row-major metadata ops.
    """
    assert x.shape == (1, 3, 4), "module's view(2,3,4) requires 12 input elements"
    x2d = x.reshape(3, 4)                     # free metadata reshape
    out_flat = pl.pallas_call(
        _cat_view_relu_kernel,
        out_shape=jax.ShapeDtypeStruct((6, 4), x.dtype),
        in_specs=[pl.BlockSpec(memory_space=pltpu.MemorySpace.VMEM)],
        out_specs=pl.BlockSpec(memory_space=pltpu.MemorySpace.VMEM),
    )(x2d)
    return out_flat.reshape(2, 3, 4)          # free metadata reshape


def _reference(x):
    y = jnp.concatenate([x, x], axis=-1)      # (1, 3, 8)
    y = y.reshape(2, 3, 4)                    # row-major view(2, 3, 4)
    return jnp.maximum(y, 0.0)


if __name__ == "__main__":
    key = jax.random.PRNGKey(0)
    x = jax.random.normal(key, (1, 3, 4), dtype=jnp.float32)

    out = cat_view_relu(x)
    out = jax.block_until_ready(out)

    ref = _reference(x)
    assert out.shape == (2, 3, 4) and out.dtype == jnp.float32
    assert jnp.allclose(out, ref), "mismatch vs pure-JAX reference"

    print("KERNEL_OK")
</pallas_src>

<mosaic_0001>
module attributes {stable_mosaic.version = 11 : i64} {
  func.func @_cat_view_relu_kernel(%arg0: memref<3x4xf32, #tpu.memory_space<vmem>>, %arg1: memref<6x4xf32, #tpu.memory_space<vmem>>) attributes {dimension_semantics = [], scalar_prefetch = 0 : i64, scratch_operands = 0 : i64, tpu.core_type = #tpu.core_type<tc>} {
    %c0 = arith.constant 0 : index
    %c0_0 = arith.constant 0 : index
    %0 = vector.load %arg0[%c0, %c0_0] : memref<3x4xf32, #tpu.memory_space<vmem>>, vector<3x4xf32>
    %cst = arith.constant 0.000000e+00 : f32
    %1 = vector.broadcast %cst : f32 to vector<3x4xf32>
    %2 = arith.maximumf %0, %1 : vector<3x4xf32>
    %3 = vector.extract_strided_slice %2 {offsets = [0, 0], sizes = [1, 4], strides = [1, 1]} : vector<3x4xf32> to vector<1x4xf32>
    %4 = vector.extract_strided_slice %2 {offsets = [1, 0], sizes = [1, 4], strides = [1, 1]} : vector<3x4xf32> to vector<1x4xf32>
    %5 = vector.extract_strided_slice %2 {offsets = [2, 0], sizes = [1, 4], strides = [1, 1]} : vector<3x4xf32> to vector<1x4xf32>
    %6 = tpu.concatenate %3, %3, %4, %4, %5, %5 in 0 : vector<1x4xf32>, vector<1x4xf32>, vector<1x4xf32>, vector<1x4xf32>, vector<1x4xf32>, vector<1x4xf32> -> vector<6x4xf32>
    %c0_1 = arith.constant 0 : index
    %c0_2 = arith.constant 0 : index
    %7 = vector.load %arg1[%c0_1, %c0_2] : memref<6x4xf32, #tpu.memory_space<vmem>>, vector<6x4xf32>
    tpu.vector_store %arg1[%c0_1, %c0_2], %6 {strides = array<i32>} : memref<6x4xf32, #tpu.memory_space<vmem>>, vector<6x4xf32>,
    return
  }
}

</mosaic_0001>

<llo_original>
// kernel: tpu_custom_call.1
$region0: #{tpu_custom_call.1}
  #allocation0 [shape = 'u32[]', space=smem, size = 0x4, offset = 0x4, fixed_abs, tag = 'smem constant byte address 0x4 - core index']
  #allocation1 [shape = 'u32[72,128]{1,0:T(1,128)}', space=vmem, size = 0x9000, scoped, tag = 'internal scratch']
  %s0 = inlined_call_operand.hbm [shape: f32[3,4], index: 0, kind: input, shape index: {}]
  %s1 = inlined_call_operand.vmem [shape: f32[6,4], index: 1, kind: output, shape index: {}]
  %s2 = sld [smem:[#allocation0]]
  $region18: #{tpu_custom_call.1} parent=0
    _
  %s4 = ssub.s32 1, %s2
  %s5 = scalar_select 0, %s4, %s2
  $region1: #{tpu_custom_call.1} parent=0
    #allocation2 [shape = 'u8[2048]{0}', space=vmem, size = 0x800, scoped, tag = 'input window, operand 0, single buffered']
    #allocation3 [shape = 's32[1]{0}', space=sflag, size = 0x4, scoped, tag = 'scoped memory for tpu_custom_call.1']
    %6 = vsyncpa [#allocation3], 0
    // Predicated region
    $region2: #{tpu_custom_call.1} parent=1 // pred_check
      _
    $region3: #{tpu_custom_call.1} parent=1 // pred_check_branch
      %8 = sbr.rel (0) target = $region5
    $region4: #{tpu_custom_call.1} parent=1 // pred_region
      %10 = vsyncadd [#allocation3], 0
      %s12 = sshll.u32 %s0, 4
      %s13 = int_to_ptr.hbm [resolvable:$true] %s12
      %s14 = sshll.u32 [#allocation2], 4
      %s15 = int_to_ptr.vmem [resolvable:$true] %s14
      %17 = dma.hbm_to_vmem [thread:$0]  %s13, 64, %s15, [#allocation3]
    $region5: #{tpu_custom_call.1} parent=1 // pred_fallthru
      _
    // Predicated region
    $region6: #{tpu_custom_call.1} parent=1 // pred_check
      _
    $region7: #{tpu_custom_call.1} parent=1 // pred_check_branch
      %19 = sbr.rel (0) target = $region9
    $region8: #{tpu_custom_call.1} parent=1 // pred_region
      %21 = dma.done [#allocation3], 64
    $region9: #{tpu_custom_call.1} parent=1 // pred_fallthru
      _
    %v22 = vld [vmem:[#allocation2] sm:$0x7]
    %v23 = vmax.f32 %v22, 0.0
    %v25 = vrot.slane %v23, 7
    %v27 = vrot.slane %v23, 6
    %v29 = vrot.slane %v23, 5
    %vm31 = vcmask 1040384
    %v32 = vsel %vm31, %v23, %v25
    %vm33 = vcmask 1041408
    %v34 = vsel %vm33, %v32, %v25
    %vm35 = vcmask 1042432
    %v36 = vsel %vm35, %v34, %v27
    %vm37 = vcmask 1043456
    %v38 = vsel %vm37, %v36, %v27
    %vm39 = vcmask 1044480
    %v40 = vsel %vm39, %v38, %v29
    %vm41 = vcmask 29696
    %42 = vst.msk [vmem:[%s1] sm:$0x3f] %vm41, %v40
    // Predicated region
    $region10: #{tpu_custom_call.1} parent=1 // pred_check
      _
    $region11: #{tpu_custom_call.1} parent=1 // pred_check_branch
      %44 = sbr.rel (0) target = $region13
    $region12: #{tpu_custom_call.1} parent=1 // pred_region
      _
    $region13: #{tpu_custom_call.1} parent=1 // pred_fallthru
      _
    // Predicated region
    $region14: #{tpu_custom_call.1} parent=1 // pred_check
      _
    $region15: #{tpu_custom_call.1} parent=1 // pred_check_branch
      %46 = sbr.rel (0) target = $region17
    $region16: #{tpu_custom_call.1} parent=1 // pred_region
      _
    $region17: #{tpu_custom_call.1} parent=1 // pred_fallthru
      _
    %47 = vsyncpa [#allocation3], 1

</llo_original>
